<compile_context>
chip_gen: v7x
topology: tpu7x:2x2x1
jax: 0.10.0
libtpu: 0.0.40
codegen_flags: <defaults>
</compile_context>

<pallas_src>
import functools

import jax
import jax.numpy as jnp
from jax.experimental import pallas as pl
from jax.experimental.pallas import tpu as pltpu

HIDDEN = 256


def critic_head_kernel(x_ref, w1_ref, b1_ref, w2_ref, b2_ref, o_ref):
    # Layer 1 on the MXU with f32 accumulation; bias + ReLU on the VPU in f32.
    h = jnp.dot(x_ref[...], w1_ref[...], preferred_element_type=jnp.float32)
    h = jnp.maximum(h + b1_ref[...].astype(jnp.float32), 0.0)          # (TM, 256) f32

    # Layer 2: (TM, 256) @ (256, 1) on the MXU -> tiny (TM, 1) column.  Only
    # this TM-element column gets relayouted (XLU) into the lane-dense (1, TM)
    # output row -- no transpose of the full hidden activation.
    v = jnp.dot(h, w2_ref[...].astype(jnp.float32),
                preferred_element_type=jnp.float32)                    # (TM, 1)
    v = v + b2_ref[0]                                                  # SMEM scalar bias
    o_ref[...] = v.T[None].astype(o_ref.dtype)                         # (1, 1, TM)


def _round_up(x, m):
    return ((x + m - 1) // m) * m


def _vmem_capacity_bytes():
    """Physical per-core VMEM (v5e/v6e: 128 MiB, v7x: 64 MiB); safe fallback."""
    try:
        cap = int(getattr(pltpu.get_tpu_info(), "vmem_capacity_bytes", 0))
        if cap > 0:
            return cap
    except Exception:
        pass
    return 64 << 20   # conservative default (smallest current generation)


def _vmem_need(bm, x_bufs, in_size, hidden, x_isz, w_isz):
    return (x_bufs * bm * in_size * x_isz     # streamed x tiles (multi-buffered)
            + in_size * hidden * w_isz        # w1: grid-invariant -> single buffer
            + bm * hidden * 4                 # hidden activation in f32
            + 2 * bm * 4                      # (1, bm) out row, double-buffered
            + (1 << 20))                      # b1 / w2 tiles, sems, misc slack


def _x_block_spec(block_m, in_size, deep):
    idx = lambda i: (i, 0)
    if deep:
        try:
            return pl.BlockSpec((block_m, in_size), idx,
                                pipeline_mode=pl.Buffered(3))
        except (TypeError, AttributeError):
            pass                              # older jax: fall back to default depth
    return pl.BlockSpec((block_m, in_size), idx)


@functools.partial(jax.jit, static_argnames=("block_m",))
def critic_head(x, w1, b1, w2, b2, *, block_m=None):
    B, in_size = x.shape
    hidden = w1.shape[1]
    x_isz = x.dtype.itemsize
    w_isz = w1.dtype.itemsize

    cap = _vmem_capacity_bytes()
    budget = (cap * 6) // 10          # leave headroom for compiler scratch / spills

    if block_m is None:
        # Largest 128-multiple tile (<= 512) that fits the budget; prefer an
        # even tile count >= 2 so ("parallel",) balances v7x's two TensorCores.
        candidates = [bm for bm in (512, 384, 256, 128)
                      if bm <= max(128, min(512, _round_up(B, 128)))]
        fitting = [bm for bm in candidates
                   if _vmem_need(bm, 3, in_size, hidden, x_isz, w_isz) <= budget]
        if not fitting:
            fitting = [bm for bm in candidates
                       if _vmem_need(bm, 2, in_size, hidden, x_isz, w_isz) <= budget]
        if not fitting:
            # TODO(synk): for very large input_size, tile the K dimension instead
            # of relying on a single (128, in_size) x tile fitting in VMEM.
            fitting = [candidates[-1]]
        block_m = next((bm for bm in fitting
                        if pl.cdiv(B, bm) >= 2 and pl.cdiv(B, bm) % 2 == 0),
                       fitting[0])

    # Partial last tile handled by Pallas boundary masking -- no jnp.pad of x.
    num_tiles = pl.cdiv(B, block_m)
    deep = (num_tiles >= 4 and
            _vmem_need(block_m, 3, in_size, hidden, x_isz, w_isz) <= budget)
    x_bufs = 3 if deep else 2

    need = _vmem_need(block_m, x_bufs, in_size, hidden, x_isz, w_isz)
    vmem_limit = int(min(max(need + (8 << 20), 32 << 20), (cap * 3) // 4))

    cost = pl.CostEstimate(
        flops=2 * B * in_size * hidden + 2 * B * hidden,
        transcendentals=0,
        bytes_accessed=(B * in_size * x_isz + in_size * hidden * w_isz
                        + hidden * (w_isz + b1.dtype.itemsize) + B * x_isz),
    )

    out_rows = pl.pallas_call(
        critic_head_kernel,
        out_shape=jax.ShapeDtypeStruct((num_tiles, 1, block_m), x.dtype),
        grid_spec=pltpu.PrefetchScalarGridSpec(
            num_scalar_prefetch=0,
            grid=(num_tiles,),
            in_specs=[
                # x tile: the only array streamed per grid step.
                _x_block_spec(block_m, in_size, deep),
                # Grid-invariant params: fetched once, stay resident in VMEM.
                pl.BlockSpec((in_size, hidden), lambda i: (0, 0)),    # w1
                pl.BlockSpec((1, hidden), lambda i: (0, 0)),          # b1
                pl.BlockSpec((hidden, 1), lambda i: (0, 0)),          # w2 column
                # b2: single scalar, kept in SMEM (no VMEM tile / DMA).
                pl.BlockSpec(memory_space=pltpu.MemorySpace.SMEM),
            ],
            # Lane-dense output: one (1, block_m) row per grid step.
            out_specs=pl.BlockSpec((1, 1, block_m), lambda i: (i, 0, 0)),
        ),
        compiler_params=pltpu.CompilerParams(
            dimension_semantics=("parallel",),
            vmem_limit_bytes=vmem_limit,
        ),
        cost_estimate=cost,
    )(x, w1, b1, w2, b2)

    # (num_tiles, 1, block_m) lane-dense rows -> (B, 1) column.  The [:B] slice
    # drops the partial-last-tile garbage positions (rows are independent, so
    # every valid row is exact).
    return out_rows.reshape(-1)[:B].reshape(B, 1)


def init_params(key, input_size, hidden=HIDDEN, dtype=jnp.float32):
    """Deterministic init mirroring CriticHead.__init__.

    fc.weight : orthogonal, PyTorch shape (256, input_size); stored transposed
                as w1 = (input_size, 256).
    fc.bias   : zeros, stored as (1, 256).
    fc2       : PyTorch default Linear init U(-1/sqrt(256), 1/sqrt(256));
                fc2.weight stored transposed as w2 = (256, 1), bias (1,).
    """
    k1, k2, k3 = jax.random.split(key, 3)
    a = jax.random.normal(k1, (hidden, input_size), dtype=jnp.float32)
    q, r = jnp.linalg.qr(a)
    q = q * jnp.sign(jnp.diag(r))[None, :]           # fix sign for determinism
    w1 = q.T.astype(dtype)                           # (input_size, 256)
    b1 = jnp.zeros((1, hidden), dtype=dtype)

    bound = 1.0 / jnp.sqrt(jnp.array(hidden, jnp.float32))
    w2 = jax.random.uniform(k2, (hidden, 1), dtype=jnp.float32,
                            minval=-bound, maxval=bound).astype(dtype)
    b2 = jax.random.uniform(k3, (1,), dtype=jnp.float32,
                            minval=-bound, maxval=bound).astype(dtype)
    return w1, b1, w2, b2


if __name__ == "__main__":
    key = jax.random.PRNGKey(0)
    kx1, kp1, kx2, kp2, kx3, kp3 = jax.random.split(key, 6)

    def reference(x, w1, b1, w2, b2):
        h = jnp.maximum(x.astype(jnp.float32) @ w1.astype(jnp.float32)
                        + b1.astype(jnp.float32), 0.0)
        return h @ w2.astype(jnp.float32) + b2.astype(jnp.float32)[None, :]

    # 1) Small demo shape (module hidden size is fixed at 256).
    B, input_size = 8, 32
    x = jax.random.normal(kx1, (B, input_size), dtype=jnp.float32)
    params = init_params(kp1, input_size)
    out = jax.block_until_ready(critic_head(x, *params))
    assert out.shape == (B, 1), out.shape
    assert jnp.allclose(out, reference(x, *params), atol=1e-4, rtol=1e-4)

    # 2) Ragged batch: partial last tile (no wrapper-side padding), even 2-tile grid.
    B2, in2 = 300, 96
    x2 = jax.random.normal(kx2, (B2, in2), dtype=jnp.float32)
    params2 = init_params(kp2, in2)
    out2 = jax.block_until_ready(critic_head(x2, *params2))
    assert out2.shape == (B2, 1), out2.shape
    assert jnp.allclose(out2, reference(x2, *params2), atol=1e-4, rtol=1e-4)

    # 3) Larger batch: even multi-tile grid, 3-deep x pipeline, partial last tile.
    B3, in3 = 1664, 48
    x3 = jax.random.normal(kx3, (B3, in3), dtype=jnp.float32)
    params3 = init_params(kp3, in3)
    out3 = jax.block_until_ready(critic_head(x3, *params3))
    assert out3.shape == (B3, 1), out3.shape
    assert jnp.allclose(out3, reference(x3, *params3), atol=1e-4, rtol=1e-4)

    print("KERNEL_OK")
</pallas_src>

<mosaic_0001>
module attributes {stable_mosaic.version = 11 : i64} {
  func.func @critic_head_kernel(%arg0: i32, %arg1: memref<128x32xf32, #tpu.memory_space<vmem>>, %arg2: memref<32x256xf32, #tpu.memory_space<vmem>>, %arg3: memref<1x256xf32, #tpu.memory_space<vmem>>, %arg4: memref<256x1xf32, #tpu.memory_space<vmem>>, %arg5: memref<1xf32, #tpu.memory_space<smem>>, %arg6: memref<1x1x128xf32, #tpu.memory_space<vmem>>) attributes {dimension_semantics = [#tpu.dimension_semantics<parallel>], iteration_bounds = array<i64: 1>, scalar_prefetch = 0 : i64, scratch_operands = 0 : i64, tpu.core_type = #tpu.core_type<tc>, window_params = [{transform_indices = @transform_0, window_bounds = array<i64: 128, 32>}, {pipeline_mode = #tpu.pipeline_mode<synchronous>, transform_indices = @transform_1, window_bounds = array<i64: 32, 256>}, {pipeline_mode = #tpu.pipeline_mode<synchronous>, transform_indices = @transform_2, window_bounds = array<i64: 1, 256>}, {pipeline_mode = #tpu.pipeline_mode<synchronous>, transform_indices = @transform_3, window_bounds = array<i64: 256, 1>}, {transform_indices = @transform_4, window_bounds = array<i64: 1>}, {transform_indices = @transform_5, window_bounds = array<i64: 1, 1, 128>}]} {
    %c0 = arith.constant 0 : index
    %c0_0 = arith.constant 0 : index
    %0 = vector.load %arg1[%c0, %c0_0] : memref<128x32xf32, #tpu.memory_space<vmem>>, vector<128x32xf32>
    %c0_1 = arith.constant 0 : index
    %c0_2 = arith.constant 0 : index
    %1 = vector.load %arg2[%c0_1, %c0_2] : memref<32x256xf32, #tpu.memory_space<vmem>>, vector<32x256xf32>
    %cst = arith.constant dense<0.000000e+00> : vector<128x256xf32>
    %2 = tpu.matmul %0, %1, %cst {dimension_numbers = #tpu.dot_dimension_numbers<[1], [0], [0], [1], [0, 0, 1, 1], [], []>} : vector<128x32xf32>, vector<32x256xf32>, vector<128x256xf32> -> vector<128x256xf32>
    %c0_3 = arith.constant 0 : index
    %c0_4 = arith.constant 0 : index
    %3 = vector.load %arg3[%c0_3, %c0_4] : memref<1x256xf32, #tpu.memory_space<vmem>>, vector<1x256xf32>
    %4 = vector.broadcast %3 : vector<1x256xf32> to vector<128x256xf32>
    %5 = arith.addf %2, %4 : vector<128x256xf32>
    %cst_5 = arith.constant 0.000000e+00 : f32
    %6 = vector.broadcast %cst_5 : f32 to vector<128x256xf32>
    %7 = arith.maximumf %5, %6 : vector<128x256xf32>
    %c0_6 = arith.constant 0 : index
    %c0_7 = arith.constant 0 : index
    %8 = vector.load %arg4[%c0_6, %c0_7] : memref<256x1xf32, #tpu.memory_space<vmem>>, vector<256x1xf32>
    %cst_8 = arith.constant dense<0.000000e+00> : vector<128x1xf32>
    %9 = tpu.matmul %7, %8, %cst_8 {dimension_numbers = #tpu.dot_dimension_numbers<[1], [0], [0], [1], [0, 0, 1, 1], [], []>} : vector<128x256xf32>, vector<256x1xf32>, vector<128x1xf32> -> vector<128x1xf32>
    %c0_9 = arith.constant 0 : index
    %10 = memref.load %arg5[%c0_9] : memref<1xf32, #tpu.memory_space<smem>>
    %11 = vector.broadcast %10 : f32 to vector<128x1xf32>
    %12 = arith.addf %9, %11 : vector<128x1xf32>
    %13 = tpu.transpose %12, [1, 0] : vector<128x1xf32> -> vector<1x128xf32>
    %14 = vector.shape_cast %13 : vector<1x128xf32> to vector<1x1x128xf32>
    %c0_10 = arith.constant 0 : index
    %c0_11 = arith.constant 0 : index
    %c0_12 = arith.constant 0 : index
    %15 = vector.load %arg6[%c0_10, %c0_11, %c0_12] : memref<1x1x128xf32, #tpu.memory_space<vmem>>, vector<1x1x128xf32>
    tpu.vector_store %arg6[%c0_10, %c0_11, %c0_12], %14 {strides = array<i32>} : memref<1x1x128xf32, #tpu.memory_space<vmem>>, vector<1x1x128xf32>,
    return
  }
  func.func @transform_0(%arg0: i32) -> (i32, i32) {
    %c0_i32 = arith.constant 0 : i32
    %c0_i32_0 = arith.constant 0 : i32
    return %arg0, %c0_i32 : i32, i32
  }
  func.func @transform_1(%arg0: i32) -> (i32, i32) {
    %c0_i32 = arith.constant 0 : i32
    %c0_i32_0 = arith.constant 0 : i32
    %c0_i32_1 = arith.constant 0 : i32
    return %c0_i32, %c0_i32_0 : i32, i32
  }
  func.func @transform_2(%arg0: i32) -> (i32, i32) {
    %c0_i32 = arith.constant 0 : i32
    %c0_i32_0 = arith.constant 0 : i32
    %c0_i32_1 = arith.constant 0 : i32
    return %c0_i32, %c0_i32_0 : i32, i32
  }
  func.func @transform_3(%arg0: i32) -> (i32, i32) {
    %c0_i32 = arith.constant 0 : i32
    %c0_i32_0 = arith.constant 0 : i32
    %c0_i32_1 = arith.constant 0 : i32
    return %c0_i32, %c0_i32_0 : i32, i32
  }
  func.func @transform_4(%arg0: i32) -> i32 {
    %c0_i32 = arith.constant 0 : i32
    %c0_i32_0 = arith.constant 0 : i32
    return %c0_i32 : i32
  }
  func.func @transform_5(%arg0: i32) -> (i32, i32, i32) {
    %c0_i32 = arith.constant 0 : i32
    %c0_i32_0 = arith.constant 0 : i32
    %c0_i32_1 = arith.constant 0 : i32
    return %arg0, %c0_i32, %c0_i32_0 : i32, i32, i32
  }
}

</mosaic_0001>

<llo_original>
// kernel: critic_head.1
$region0: #{critic_head.1}
  #allocation0 [shape = 'u32[]', space=smem, size = 0x4, offset = 0x4, fixed_abs, tag = 'smem constant byte address 0x4 - core index']
  #allocation1 [shape = 'u32[144,128]{1,0:T(1,128)}', space=vmem, size = 0x12000, scoped, tag = 'internal scratch']
  #allocation2 [shape = 'f32[1]{0:T(128)S(6)}', space=smem, size = 0x200, scoped, tag = 'scoped memory for critic_head.1']
  %s0 = inlined_call_operand.vmem [shape: f32[8,32], index: 0, kind: input, shape index: {}]
  %s1 = inlined_call_operand.vmem [shape: f32[32,256], index: 1, kind: input, shape index: {}]
  %s2 = inlined_call_operand.vmem [shape: f32[1,256], index: 2, kind: input, shape index: {}]
  %s3 = inlined_call_operand.vmem [shape: f32[256,1], index: 3, kind: input, shape index: {}]
  %s4 = inlined_call_operand.<no memory space> [shape: f32[1], index: 4, kind: input, shape index: {}]
  %s5 = inlined_call_operand.vmem [shape: f32[1,1,128], index: 5, kind: output, shape index: {}]
  %s6 = sld [smem:[#allocation0]]
  $region30: #{critic_head.1} parent=0
    _
  %s8 = ssub.s32 1, %s6
  %s9 = scalar_select 0, %s8, %s6
  %10 = sst [smem:[#allocation2]] %s4
  // Predicated region
  $region2: #{critic_head.1} parent=0 // pred_check
    _
  $region3: #{critic_head.1} parent=0 // pred_check_branch
    %12 = sbr.rel (0) target = $region5
  $region4: #{critic_head.1} parent=0 // pred_region
    _
  $region5: #{critic_head.1} parent=0 // pred_fallthru
    _
  // Predicated region
  $region6: #{critic_head.1} parent=0 // pred_check
    _
  $region7: #{critic_head.1} parent=0 // pred_check_branch
    %14 = sbr.rel (0) target = $region9
  $region8: #{critic_head.1} parent=0 // pred_region
    _
  $region9: #{critic_head.1} parent=0 // pred_fallthru
    _
  // Predicated region
  $region10: #{critic_head.1} parent=0 // pred_check
    _
  $region11: #{critic_head.1} parent=0 // pred_check_branch
    %16 = sbr.rel (0) target = $region13
  $region12: #{critic_head.1} parent=0 // pred_region
    _
  $region13: #{critic_head.1} parent=0 // pred_fallthru
    _
  // Predicated region
  $region14: #{critic_head.1} parent=0 // pred_check
    _
  $region15: #{critic_head.1} parent=0 // pred_check_branch
    %18 = sbr.rel (0) target = $region17
  $region16: #{critic_head.1} parent=0 // pred_region
    _
  $region17: #{critic_head.1} parent=0 // pred_fallthru
    _
  // Predicated region
  $region18: #{critic_head.1} parent=0 // pred_check
    _
  $region19: #{critic_head.1} parent=0 // pred_check_branch
    %20 = sbr.rel (0) target = $region21
  $region20: #{critic_head.1} parent=0 // pred_region
    _
  $region21: #{critic_head.1} parent=0 // pred_fallthru
    _
  %v21 = vld [vmem:[%s0] sm:$0xff]
  %v22 = vld [vmem:[%s0 + $0x8] sm:$0xff]
  %v23 = vld [vmem:[%s0 + $0x10] sm:$0xff]
  %v24 = vld [vmem:[%s0 + $0x18] sm:$0xff]
  %v25 = vld [vmem:[%s0 + $0x20] sm:$0xff]
  %v26 = vld [vmem:[%s0 + $0x28] sm:$0xff]
  %v27 = vld [vmem:[%s0 + $0x30] sm:$0xff]
  %v28 = vld [vmem:[%s0 + $0x38] sm:$0xff]
  %v29 = vld [vmem:[%s0 + $0x40] sm:$0xff]
  %v30 = vld [vmem:[%s0 + $0x48] sm:$0xff]
  %v31 = vld [vmem:[%s0 + $0x50] sm:$0xff]
  %v32 = vld [vmem:[%s0 + $0x58] sm:$0xff]
  %v33 = vld [vmem:[%s0 + $0x60] sm:$0xff]
  %v34 = vld [vmem:[%s0 + $0x68] sm:$0xff]
  %v35 = vld [vmem:[%s0 + $0x70] sm:$0xff]
  %v36 = vld [vmem:[%s0 + $0x78] sm:$0xff]
  %v37 = vld [vmem:[%s1] sm:$0xff]
  %v38 = vld [vmem:[%s1 + $0x8] sm:$0xff]
  %v39 = vld [vmem:[%s1 + $0x10] sm:$0xff]
  %v40 = vld [vmem:[%s1 + $0x18] sm:$0xff]
  %v41 = vld [vmem:[%s1 + $0x20] sm:$0xff]
  %v42 = vld [vmem:[%s1 + $0x28] sm:$0xff]
  %v43 = vld [vmem:[%s1 + $0x30] sm:$0xff]
  %v44 = vld [vmem:[%s1 + $0x38] sm:$0xff]
  %v45 = vld [vmem:[%s2] sm:$0x3]
  %v47 = vlaneseq
  %v48 = vshrl.u32 %v47, 7
  %v49 = vsub.s32 0, %v48
  %v50 = vrot.slane %v45, %v49
  %v51 = vlaneseq
  %v52 = vshrl.u32 %v51, 7
  %v53 = vsub.s32 1, %v52
  %v54 = vrot.slane %v45, %v53
  %vm57 = vcmask 261120
  %v59 = vsel %vm57, %v21, 0
  %v62 = vsel %vm57, %v22, 0
  %v65 = vsel %vm57, %v23, 0
  %v68 = vsel %vm57, %v24, 0
  %v71 = vsel %vm57, %v25, 0
  %v74 = vsel %vm57, %v26, 0
  %v77 = vsel %vm57, %v27, 0
  %v80 = vsel %vm57, %v28, 0
  %v83 = vsel %vm57, %v29, 0
  %v86 = vsel %vm57, %v30, 0
  %v89 = vsel %vm57, %v31, 0
  %v92 = vsel %vm57, %v32, 0
  %v95 = vsel %vm57, %v33, 0
  %v98 = vsel %vm57, %v34, 0
  %v101 = vsel %vm57, %v35, 0
  %v104 = vsel %vm57, %v36, 0
  %106 = vmatprep.subr.mxu0 %v38
  %107 = vmatpush1.msra.mxu0 %v37
  %108 = vmatprep.subr.mxu0 %v40
  %109 = vmatpush1.msra.mxu0 %v39
  %110 = vmatprep.subr.mxu0 %v42
  %111 = vmatpush1.msra.mxu0 %v41
  %112 = vmatprep.subr.mxu0 %v44
  %113 = vmatpush1.msra.mxu0 %v43
  %114 = vmatprep.subr.mxu0 0.0
  %115 = vmatpush1.msra.mxu0 0.0
  %116 = vmatprep.subr.mxu0 0.0
  %117 = vmatpush1.msra.mxu0 0.0
  %118 = vmatprep.subr.mxu0 0.0
  %119 = vmatpush1.msra.mxu0 0.0
  %120 = vmatprep.subr.mxu0 0.0
  %121 = vmatpush1.msra.mxu0 0.0
  %122 = vmatprep.subr.mxu0 0.0
  %123 = vmatpush1.msra.mxu0 0.0
  %124 = vmatprep.subr.mxu0 0.0
  %125 = vmatpush1.msra.mxu0 0.0
  %126 = vmatprep.subr.mxu0 0.0
  %127 = vmatpush1.msra.mxu0 0.0
  %128 = vmatprep.subr.mxu0 0.0
  %129 = vmatpush1.msra.mxu0 0.0
  %130 = vmatprep.subr.mxu0 0.0
  %131 = vmatpush1.msra.mxu0 0.0
  %132 = vmatprep.subr.mxu0 0.0
  %133 = vmatpush1.msra.mxu0 0.0
  %134 = vmatprep.subr.mxu0 0.0
  %135 = vmatpush1.msra.mxu0 0.0
  %136 = vmatprep.subr.mxu0 0.0
  %137 = vmatpush1.msra.mxu0 0.0
  %138 = vmatprep.subr.mxu0 0.0
  %139 = vmatpush1.msra.mxu0 0.0
  %140 = vmatprep.subr.mxu0 0.0
  %141 = vmatpush1.msra.mxu0 0.0
  %142 = vmatprep.subr.mxu0 0.0
  %143 = vmatpush1.msra.mxu0 0.0
  %144 = vmatprep.subr.mxu0 0.0
  %145 = vmatpush1.msra.mxu0 0.0
  %146 = vmatprep.subr.mxu0 0.0
  %147 = vmatpush1.msra.mxu0 0.0
  %148 = vmatprep.subr.mxu0 0.0
  %149 = vmatpush1.msra.mxu0 0.0
  %150 = vmatprep.subr.mxu0 0.0
  %151 = vmatpush1.msra.mxu0 0.0
  %152 = vmatprep.subr.mxu0 0.0
  %153 = vmatpush1.msra.mxu0 0.0
  %154 = vmatprep.subr.mxu0 0.0
  %155 = vmatpush1.msra.mxu0 0.0
  %156 = vmatprep.subr.mxu0 0.0
  %157 = vmatpush1.msra.mxu0 0.0
  %158 = vmatprep.subr.mxu0 0.0
  %159 = vmatpush1.msra.mxu0 0.0
  %160 = vmatprep.subr.mxu0 0.0
  %161 = vmatpush1.msra.mxu0 0.0
  %162 = vmatprep.subr.mxu0 0.0
  %163 = vmatpush1.msra.mxu0 0.0
  %164 = vmatprep.subr.mxu0 0.0
  %165 = vmatpush1.msra.mxu0 0.0
  %166 = vmatprep.subr.mxu0 0.0
  %167 = vmatpush1.msra.mxu0 0.0
  %168 = vmatprep.subr.mxu0 0.0
  %169 = vmatpush1.msra.mxu0 0.0
  %170 = vmatprep.mubr.f32.mxu0 0.0
  %171 = vmatmul.mubr.f32.gmra.mrb[0].mxu0 %v59
  %v172 = vpop.f32.mrb[0].mxu0
  %v173 = vadd.f32 %v50, %v172
  %v174 = vpop.f32.mrb[0].mxu0
  %v175 = vadd.f32 %v54, %v174
  %176 = vmatprep.mubr.f32.mxu0 0.0
  %177 = vmatmul.mubr.f32.gmra.mrb[0].mxu0 %v62
  %v178 = vpop.f32.mrb[0].mxu0
  %v179 = vadd.f32 %v50, %v178
  %v180 = vpop.f32.mrb[0].mxu0
  %v181 = vadd.f32 %v54, %v180
  %182 = vmatprep.mubr.f32.mxu0 0.0
  %183 = vmatmul.mubr.f32.gmra.mrb[0].mxu0 %v65
  %v184 = vpop.f32.mrb[0].mxu0
  %v185 = vadd.f32 %v50, %v184
  %v186 = vpop.f32.mrb[0].mxu0
  %v187 = vadd.f32 %v54, %v186
  %188 = vmatprep.mubr.f32.mxu0 0.0
  %189 = vmatmul.mubr.f32.gmra.mrb[0].mxu0 %v68
  %v190 = vpop.f32.mrb[0].mxu0
  %v191 = vadd.f32 %v50, %v190
  %v192 = vpop.f32.mrb[0].mxu0
  %v193 = vadd.f32 %v54, %v192
  %194 = vmatprep.mubr.f32.mxu0 0.0
  %195 = vmatmul.mubr.f32.gmra.mrb[0].mxu0 %v71
  %v196 = vpop.f32.mrb[0].mxu0
  %v197 = vadd.f32 %v50, %v196
  %v198 = vpop.f32.mrb[0].mxu0
  %v199 = vadd.f32 %v54, %v198
  %200 = vmatprep.mubr.f32.mxu0 0.0
  %201 = vmatmul.mubr.f32.gmra.mrb[0].mxu0 %v74
  %v202 = vpop.f32.mrb[0].mxu0
  %v203 = vadd.f32 %v50, %v202
  %v204 = vpop.f32.mrb[0].mxu0
  %v205 = vadd.f32 %v54, %v204
  %206 = vmatprep.mubr.f32.mxu0 0.0
  %207 = vmatmul.mubr.f32.gmra.mrb[0].mxu0 %v77
  %v208 = vpop.f32.mrb[0].mxu0
  %v209 = vadd.f32 %v50, %v208
  %v210 = vpop.f32.mrb[0].mxu0
  %v211 = vadd.f32 %v54, %v210
  %212 = vmatprep.mubr.f32.mxu0 0.0
  %213 = vmatmul.mubr.f32.gmra.mrb[0].mxu0 %v80
  %v214 = vpop.f32.mrb[0].mxu0
  %v215 = vadd.f32 %v50, %v214
  %v216 = vpop.f32.mrb[0].mxu0
  %v217 = vadd.f32 %v54, %v216
  %218 = vmatprep.mubr.f32.mxu0 0.0
  %219 = vmatmul.mubr.f32.gmra.mrb[0].mxu0 %v83
  %v220 = vpop.f32.mrb[0].mxu0
  %v221 = vadd.f32 %v50, %v220
  %v222 = vpop.f32.mrb[0].mxu0
  %v223 = vadd.f32 %v54, %v222
  %224 = vmatprep.mubr.f32.mxu0 0.0
  %225 = vmatmul.mubr.f32.gmra.mrb[0].mxu0 %v86
  %v226 = vpop.f32.mrb[0].mxu0
  %v227 = vadd.f32 %v50, %v226
  %v228 = vpop.f32.mrb[0].mxu0
  %v229 = vadd.f32 %v54, %v228
  %230 = vmatprep.mubr.f32.mxu0 0.0
  %231 = vmatmul.mubr.f32.gmra.mrb[0].mxu0 %v89
  %v232 = vpop.f32.mrb[0].mxu0
  %v233 = vadd.f32 %v50, %v232
  %v234 = vpop.f32.mrb[0].mxu0
  %v235 = vadd.f32 %v54, %v234
  %236 = vmatprep.mubr.f32.mxu0 0.0
  %237 = vmatmul.mubr.f32.gmra.mrb[0].mxu0 %v92
  %v238 = vpop.f32.mrb[0].mxu0
  %v239 = vadd.f32 %v50, %v238
  %v240 = vpop.f32.mrb[0].mxu0
  %v241 = vadd.f32 %v54, %v240
  %242 = vmatprep.mubr.f32.mxu0 0.0
  %243 = vmatmul.mubr.f32.gmra.mrb[0].mxu0 %v95
  %v244 = vpop.f32.mrb[0].mxu0
  %v245 = vadd.f32 %v50, %v244
  %v246 = vpop.f32.mrb[0].mxu0
  %v247 = vadd.f32 %v54, %v246
  %248 = vmatprep.mubr.f32.mxu0 0.0
  %249 = vmatmul.mubr.f32.gmra.mrb[0].mxu0 %v98
  %v250 = vpop.f32.mrb[0].mxu0
  %v251 = vadd.f32 %v50, %v250
  %v252 = vpop.f32.mrb[0].mxu0
  %v253 = vadd.f32 %v54, %v252
  %254 = vmatprep.mubr.f32.mxu0 0.0
  %255 = vmatmul.mubr.f32.gmra.mrb[0].mxu0 %v101
  %v256 = vpop.f32.mrb[0].mxu0
  %v257 = vadd.f32 %v50, %v256
  %v258 = vpop.f32.mrb[0].mxu0
  %v259 = vadd.f32 %v54, %v258
  %260 = vmatprep.mubr.f32.mxu0 0.0
  %261 = vmatmul.mubr.f32.gmra.mrb[0].mxu0 %v104
  %v262 = vpop.f32.mrb[0].mxu0
  %v263 = vadd.f32 %v50, %v262
  %v264 = vpop.f32.mrb[0].mxu0
  %v265 = vadd.f32 %v54, %v264
  %266 = vdwg.mxu0
  %v267 = vmax.f32 %v173, 0.0
  %v268 = vmax.f32 %v175, 0.0
  %v269 = vmax.f32 %v179, 0.0
  %v270 = vmax.f32 %v181, 0.0
  %v271 = vmax.f32 %v185, 0.0
  %v272 = vmax.f32 %v187, 0.0
  %v273 = vmax.f32 %v191, 0.0
  %v274 = vmax.f32 %v193, 0.0
  %v275 = vmax.f32 %v197, 0.0
  %v276 = vmax.f32 %v199, 0.0
  %v277 = vmax.f32 %v203, 0.0
  %v278 = vmax.f32 %v205, 0.0
  %v279 = vmax.f32 %v209, 0.0
  %v280 = vmax.f32 %v211, 0.0
  %v281 = vmax.f32 %v215, 0.0
  %v282 = vmax.f32 %v217, 0.0
  %v283 = vmax.f32 %v221, 0.0
  %v284 = vmax.f32 %v223, 0.0
  %v285 = vmax.f32 %v227, 0.0
  %v286 = vmax.f32 %v229, 0.0
  %v287 = vmax.f32 %v233, 0.0
  %v288 = vmax.f32 %v235, 0.0
  %v289 = vmax.f32 %v239, 0.0
  %v290 = vmax.f32 %v241, 0.0
  %v291 = vmax.f32 %v245, 0.0
  %v292 = vmax.f32 %v247, 0.0
  %v293 = vmax.f32 %v251, 0.0
  %v294 = vmax.f32 %v253, 0.0
  %v295 = vmax.f32 %v257, 0.0
  %v296 = vmax.f32 %v259, 0.0
  %v297 = vmax.f32 %v263, 0.0
  %v298 = vmax.f32 %v265, 0.0
  %v299 = vld [vmem:[%s3] sm:$0xff]
  %v300 = vld [vmem:[%s3 + $0x8] sm:$0xff]
  %v301 = vld [vmem:[%s3 + $0x10] sm:$0xff]
  %v302 = vld [vmem:[%s3 + $0x18] sm:$0xff]
  %v303 = vld [vmem:[%s3 + $0x20] sm:$0xff]
  %v304 = vld [vmem:[%s3 + $0x28] sm:$0xff]
  %v305 = vld [vmem:[%s3 + $0x30] sm:$0xff]
  %v306 = vld [vmem:[%s3 + $0x38] sm:$0xff]
  %v307 = vld [vmem:[%s3 + $0x40] sm:$0xff]
  %v308 = vld [vmem:[%s3 + $0x48] sm:$0xff]
  %v309 = vld [vmem:[%s3 + $0x50] sm:$0xff]
  %v310 = vld [vmem:[%s3 + $0x58] sm:$0xff]
  %v311 = vld [vmem:[%s3 + $0x60] sm:$0xff]
  %v312 = vld [vmem:[%s3 + $0x68] sm:$0xff]
  %v313 = vld [vmem:[%s3 + $0x70] sm:$0xff]
  %v314 = vld [vmem:[%s3 + $0x78] sm:$0xff]
  %v315 = vld [vmem:[%s3 + $0x80] sm:$0xff]
  %v316 = vld [vmem:[%s3 + $0x88] sm:$0xff]
  %v317 = vld [vmem:[%s3 + $0x90] sm:$0xff]
  %v318 = vld [vmem:[%s3 + $0x98] sm:$0xff]
  %v319 = vld [vmem:[%s3 + $0xa0] sm:$0xff]
  %v320 = vld [vmem:[%s3 + $0xa8] sm:$0xff]
  %v321 = vld [vmem:[%s3 + $0xb0] sm:$0xff]
  %v322 = vld [vmem:[%s3 + $0xb8] sm:$0xff]
  %v323 = vld [vmem:[%s3 + $0xc0] sm:$0xff]
  %v324 = vld [vmem:[%s3 + $0xc8] sm:$0xff]
  %v325 = vld [vmem:[%s3 + $0xd0] sm:$0xff]
  %v326 = vld [vmem:[%s3 + $0xd8] sm:$0xff]
  %v327 = vld [vmem:[%s3 + $0xe0] sm:$0xff]
  %v328 = vld [vmem:[%s3 + $0xe8] sm:$0xff]
  %v329 = vld [vmem:[%s3 + $0xf0] sm:$0xff]
  %v330 = vld [vmem:[%s3 + $0xf8] sm:$0xff]
  %s331 = sld [smem:[#allocation2]]
  %v332 = vstv %s331
  %333 = vmatprep.subr.mxu0 0.0
  %334 = vmatpush1.msra.mxu0 %v299
  %335 = vmatprep.subr.mxu0 0.0
  %336 = vmatpush1.msra.mxu0 %v300
  %337 = vmatprep.subr.mxu0 0.0
  %338 = vmatpush1.msra.mxu0 %v301
  %339 = vmatprep.subr.mxu0 0.0
  %340 = vmatpush1.msra.mxu0 %v302
  %341 = vmatprep.subr.mxu0 0.0
  %342 = vmatpush1.msra.mxu0 %v303
  %343 = vmatprep.subr.mxu0 0.0
  %344 = vmatpush1.msra.mxu0 %v304
  %345 = vmatprep.subr.mxu0 0.0
  %346 = vmatpush1.msra.mxu0 %v305
  %347 = vmatprep.subr.mxu0 0.0
  %348 = vmatpush1.msra.mxu0 %v306
  %349 = vmatprep.subr.mxu0 0.0
  %350 = vmatpush1.msra.mxu0 %v307
  %351 = vmatprep.subr.mxu0 0.0
  %352 = vmatpush1.msra.mxu0 %v308
  %353 = vmatprep.subr.mxu0 0.0
  %354 = vmatpush1.msra.mxu0 %v309
  %355 = vmatprep.subr.mxu0 0.0
  %356 = vmatpush1.msra.mxu0 %v310
  %357 = vmatprep.subr.mxu0 0.0
  %358 = vmatpush1.msra.mxu0 %v311
  %359 = vmatprep.subr.mxu0 0.0
  %360 = vmatpush1.msra.mxu0 %v312
  %361 = vmatprep.subr.mxu0 0.0
  %362 = vmatpush1.msra.mxu0 %v313
  %363 = vmatprep.subr.mxu0 0.0
  %364 = vmatpush1.msra.mxu0 %v314
  %365 = vmatprep.subr.mxu0 0.0
  %366 = vmatpush1.msra.mxu0 %v315
  %367 = vmatprep.subr.mxu0 0.0
  %368 = vmatpush1.msra.mxu0 %v316
  %369 = vmatprep.subr.mxu0 0.0
  %370 = vmatpush1.msra.mxu0 %v317
  %371 = vmatprep.subr.mxu0 0.0
  %372 = vmatpush1.msra.mxu0 %v318
  %373 = vmatprep.subr.mxu0 0.0
  %374 = vmatpush1.msra.mxu0 %v319
  %375 = vmatprep.subr.mxu0 0.0
  %376 = vmatpush1.msra.mxu0 %v320
  %377 = vmatprep.subr.mxu0 0.0
  %378 = vmatpush1.msra.mxu0 %v321
  %379 = vmatprep.subr.mxu0 0.0
  %380 = vmatpush1.msra.mxu0 %v322
  %381 = vmatprep.subr.mxu0 0.0
  %382 = vmatpush1.msra.mxu0 %v323
  %383 = vmatprep.subr.mxu0 0.0
  %384 = vmatpush1.msra.mxu0 %v324
  %385 = vmatprep.subr.mxu0 0.0
  %386 = vmatpush1.msra.mxu0 %v325
  %387 = vmatprep.subr.mxu0 0.0
  %388 = vmatpush1.msra.mxu0 %v326
  %389 = vmatprep.subr.mxu0 0.0
  %390 = vmatpush1.msra.mxu0 %v327
  %391 = vmatprep.subr.mxu0 0.0
  %392 = vmatpush1.msra.mxu0 %v328
  %393 = vmatprep.subr.mxu0 0.0
  %394 = vmatpush1.msra.mxu0 %v329
  %395 = vmatprep.subr.mxu0 0.0
  %396 = vmatpush1.msra.mxu0 %v330
  %397 = vmatprep.mubr.f32.mxu0 %v268
  %398 = vmatmul.mubr.f32.gmra.mrb[0].mxu0 %v267
  %v399 = vpop.f32.mrb[0].mxu0
  %v400 = vadd.f32 %v332, %v399
  %v401 = vpop.f32.mrb[0].mxu0
  %402 = vmatprep.mubr.f32.mxu0 %v270
  %403 = vmatmul.mubr.f32.gmra.mrb[0].mxu0 %v269
  %v404 = vpop.f32.mrb[0].mxu0
  %v405 = vadd.f32 %v332, %v404
  %v406 = vpop.f32.mrb[0].mxu0
  %407 = vmatprep.mubr.f32.mxu0 %v272
  %408 = vmatmul.mubr.f32.gmra.mrb[0].mxu0 %v271
  %v409 = vpop.f32.mrb[0].mxu0
  %v410 = vadd.f32 %v332, %v409
  %v411 = vpop.f32.mrb[0].mxu0
  %412 = vmatprep.mubr.f32.mxu0 %v274
  %413 = vmatmul.mubr.f32.gmra.mrb[0].mxu0 %v273
  %v414 = vpop.f32.mrb[0].mxu0
  %v415 = vadd.f32 %v332, %v414
  %v416 = vpop.f32.mrb[0].mxu0
  %417 = vmatprep.mubr.f32.mxu0 %v276
  %418 = vmatmul.mubr.f32.gmra.mrb[0].mxu0 %v275
  %v419 = vpop.f32.mrb[0].mxu0
  %v420 = vadd.f32 %v332, %v419
  %v421 = vpop.f32.mrb[0].mxu0
  %422 = vmatprep.mubr.f32.mxu0 %v278
  %423 = vmatmul.mubr.f32.gmra.mrb[0].mxu0 %v277
  %v424 = vpop.f32.mrb[0].mxu0
  %v425 = vadd.f32 %v332, %v424
  %v426 = vpop.f32.mrb[0].mxu0
  %427 = vmatprep.mubr.f32.mxu0 %v280
  %428 = vmatmul.mubr.f32.gmra.mrb[0].mxu0 %v279
  %v429 = vpop.f32.mrb[0].mxu0
  %v430 = vadd.f32 %v332, %v429
  %v431 = vpop.f32.mrb[0].mxu0
  %432 = vmatprep.mubr.f32.mxu0 %v282
  %433 = vmatmul.mubr.f32.gmra.mrb[0].mxu0 %v281
  %v434 = vpop.f32.mrb[0].mxu0
  %v435 = vadd.f32 %v332, %v434
  %v436 = vpop.f32.mrb[0].mxu0
  %437 = vmatprep.mubr.f32.mxu0 %v284
  %438 = vmatmul.mubr.f32.gmra.mrb[0].mxu0 %v283
  %v439 = vpop.f32.mrb[0].mxu0
  %v440 = vadd.f32 %v332, %v439
  %v441 = vpop.f32.mrb[0].mxu0
  %442 = vmatprep.mubr.f32.mxu0 %v286
  %443 = vmatmul.mubr.f32.gmra.mrb[0].mxu0 %v285
  %v444 = vpop.f32.mrb[0].mxu0
  %v445 = vadd.f32 %v332, %v444
  %v446 = vpop.f32.mrb[0].mxu0
  %447 = vmatprep.mubr.f32.mxu0 %v288
  %448 = vmatmul.mubr.f32.gmra.mrb[0].mxu0 %v287
  %v449 = vpop.f32.mrb[0].mxu0
  %v450 = vadd.f32 %v332, %v449
  %v451 = vpop.f32.mrb[0].mxu0
  %452 = vmatprep.mubr.f32.mxu0 %v290
  %453 = vmatmul.mubr.f32.gmra.mrb[0].mxu0 %v289
  %v454 = vpop.f32.mrb[0].mxu0
  %v455 = vadd.f32 %v332, %v454
  %v456 = vpop.f32.mrb[0].mxu0
  %457 = vmatprep.mubr.f32.mxu0 %v292
  %458 = vmatmul.mubr.f32.gmra.mrb[0].mxu0 %v291
  %v459 = vpop.f32.mrb[0].mxu0
  %v460 = vadd.f32 %v332, %v459
  %v461 = vpop.f32.mrb[0].mxu0
  %462 = vmatprep.mubr.f32.mxu0 %v294
  %463 = vmatmul.mubr.f32.gmra.mrb[0].mxu0 %v293
  %v464 = vpop.f32.mrb[0].mxu0
  %v465 = vadd.f32 %v332, %v464
  %v466 = vpop.f32.mrb[0].mxu0
  %467 = vmatprep.mubr.f32.mxu0 %v296
  %468 = vmatmul.mubr.f32.gmra.mrb[0].mxu0 %v295
  %v469 = vpop.f32.mrb[0].mxu0
  %v470 = vadd.f32 %v332, %v469
  %v471 = vpop.f32.mrb[0].mxu0
  %472 = vmatprep.mubr.f32.mxu0 %v298
  %473 = vmatmul.mubr.f32.gmra.mrb[0].mxu0 %v297
  %v474 = vpop.f32.mrb[0].mxu0
  %v475 = vadd.f32 %v332, %v474
  %v476 = vpop.f32.mrb[0].mxu0
  %477 = vdwg.mxu0
  %478 = vxpose.xlu0.b32.start [1/16] %v400, 128
  %479 = vxpose.xlu0.b32.cont [2/16] %v405, 128
  %480 = vxpose.xlu0.b32.cont [3/16] %v410, 128
  %481 = vxpose.xlu0.b32.cont [4/16] %v415, 128
  %482 = vxpose.xlu0.b32.cont [5/16] %v420, 128
  %483 = vxpose.xlu0.b32.cont [6/16] %v425, 128
  %484 = vxpose.xlu0.b32.cont [7/16] %v430, 128
  %485 = vxpose.xlu0.b32.cont [8/16] %v435, 128
  %486 = vxpose.xlu0.b32.cont [9/16] %v440, 128
  %487 = vxpose.xlu0.b32.cont [10/16] %v445, 128
  %488 = vxpose.xlu0.b32.cont [11/16] %v450, 128
  %489 = vxpose.xlu0.b32.cont [12/16] %v455, 128
  %490 = vxpose.xlu0.b32.cont [13/16] %v460, 128
  %491 = vxpose.xlu0.b32.cont [14/16] %v465, 128
  %492 = vxpose.xlu0.b32.cont [15/16] %v470, 128
  %493 = vxpose.xlu0.b32.end [16/16] %v475, 128
  %v494 = vpop.trf.xlu0
  %v495 = vpop.trf.xlu0
  %v496 = vpop.trf.xlu0
  %v497 = vpop.trf.xlu0
  %v498 = vpop.trf.xlu0
  %v499 = vpop.trf.xlu0
  %v500 = vpop.trf.xlu0
  %v501 = vpop.trf.xlu0
  %v502 = vpop.trf.xlu0
  %v503 = vpop.trf.xlu0
  %v504 = vpop.trf.xlu0
  %v505 = vpop.trf.xlu0
  %v506 = vpop.trf.xlu0
  %v507 = vpop.trf.xlu0
  %v508 = vpop.trf.xlu0
  %v509 = vpop.trf.xlu0
  %510 = vst [vmem:[%s5] sm:$0x1] %v494
  // Predicated region
  $region22: #{critic_head.1} parent=0 // pred_check
    _
  $region23: #{critic_head.1} parent=0 // pred_check_branch
    %512 = sbr.rel (0) target = $region25
  $region24: #{critic_head.1} parent=0 // pred_region
    _
  $region25: #{critic_head.1} parent=0 // pred_fallthru
    _
  // Predicated region
  $region26: #{critic_head.1} parent=0 // pred_check
    _
  $region27: #{critic_head.1} parent=0 // pred_check_branch
    %514 = sbr.rel (0) target = $region29
  $region28: #{critic_head.1} parent=0 // pred_region
    _
  $region29: #{critic_head.1} parent=0 // pred_fallthru
    _

</llo_original>
